<compile_context>
chip_gen: v7x
topology: tpu7x:2x2x1
jax: 0.10.0
libtpu: 0.0.40
codegen_flags: <defaults>
</compile_context>

<pallas_src>
import functools

import jax
import jax.numpy as jnp
from jax.experimental import pallas as pl
from jax.experimental.pallas import tpu as pltpu

_LANE = 128
_TARGET_STEP_BYTES = 8 << 20  # ~8 MiB of (in + out) HBM traffic per grid step


def _rmsnorm_kernel(x_ref, w_ref, o_ref, *, eps, inv_dim):
    # x_ref: (tile_rows, dim_b) slab in VMEM.
    # w_ref: (1, dim_b) f32 weight, resident across all grid steps.
    x = x_ref[...].astype(jnp.float32)                        # x.float()
    # When dim < 128 the padded lanes are zero, so sum / true_dim == mean over
    # the real dim; when dim >= 128 there is no padding at all.
    ss = jnp.sum(x * x, axis=-1, keepdims=True)
    normed = x * jax.lax.rsqrt(ss * inv_dim + eps)            # rsqrt -> EUP
    # PyTorch: _norm(x.float()).type_as(x), then * f32 weight (promotes back).
    # Both casts are no-ops for f32 inputs; for bf16 they reproduce the torch
    # rounding while the weight is still applied at full precision.
    normed = normed.astype(x_ref.dtype).astype(jnp.float32)
    o_ref[...] = (normed * w_ref[...]).astype(o_ref.dtype)


def _cdiv(a, b):
    return -(-a // b)


def _round_up(v, m):
    return _cdiv(v, m) * m


def _pick_tile_rows(rows, dim_b, in_bytes, out_bytes, vmem_cap):
    # Sublane packing: 8 rows/vreg for 32-bit dtypes, 16 for bf16, 32 for i8.
    pack = 8 * max(1, 4 // in_bytes)
    row_bytes = dim_b * (in_bytes + out_bytes)

    # VMEM budget: double-buffered input + output tiles with headroom for the
    # resident weight and Mosaic internal scratch.  (Conservative enough even
    # if the reported capacity were per-chip instead of per-TC on v7x.)
    vmem_tile = max(1, int(vmem_cap * 0.45) // (2 * row_bytes))
    # Per-step HBM traffic target: amortizes the ~0.35us/step pipeline
    # overhead uniformly across dim sizes (replaces the fixed row cap).
    traffic_tile = max(1, _TARGET_STEP_BYTES // row_bytes)

    tile = min(vmem_tile, traffic_tile)
    tile = max(pack, (tile // pack) * pack)

    # Aim for >= 4 roughly equal grid steps when enough rows exist, so on v7x
    # each TensorCore gets >= 2 steps (keeps DMA/compute overlapped per core
    # and balances the ragged edge block across cores).
    if rows >= 4 * pack:
        tile = min(tile, _round_up(_cdiv(rows, 4), pack))
    # Never larger than the (sublane-rounded) row count.
    tile = min(tile, _round_up(rows, pack))
    return max(tile, pack)


def rmsnorm(x, weight, eps: float = 1e-6, out_dtype=None):
    """RMSNorm over the last axis of x, matching the PyTorch reference.

    out_dtype=None keeps torch's type promotion (x.dtype x weight.dtype).
    Pass out_dtype=x.dtype to cut store-side HBM bytes for bf16 activations.
    """
    orig_shape = x.shape
    dim = orig_shape[-1]
    assert weight.shape == (dim,)
    if out_dtype is None:
        out_dtype = jnp.promote_types(x.dtype, weight.dtype)

    rows = 1
    for s in orig_shape[:-1]:
        rows *= s
    x2d = x.reshape(rows, dim)
    # Hoist the weight cast out of the kernel: applied at full f32 precision.
    w_f32 = weight.astype(jnp.float32).reshape(1, dim)

    # Lane handling: only pad tiny dims (< 128) to one full lane group; for
    # dim >= 128 the block's last dim is the full array extent (no XLA pad /
    # crop passes, Mosaic masks the partial vreg column itself).
    dim_b = dim if dim >= _LANE else _LANE
    if dim_b != dim:
        x2d = jnp.pad(x2d, ((0, 0), (0, dim_b - dim)))
        w_f32 = jnp.pad(w_f32, ((0, 0), (0, dim_b - dim)))

    in_bytes = jnp.dtype(x.dtype).itemsize
    out_bytes = jnp.dtype(out_dtype).itemsize
    try:
        vmem_cap = pltpu.get_tpu_info().vmem_capacity_bytes
    except Exception:
        vmem_cap = 64 * 1024 * 1024  # v7x-safe fallback

    tile_rows = _pick_tile_rows(rows, dim_b, in_bytes, out_bytes, vmem_cap)
    grid = (_cdiv(rows, tile_rows),)  # no row padding; edge block is masked

    buf_bytes = 2 * tile_rows * dim_b * (in_bytes + out_bytes) + 2 * dim_b * 4
    vmem_limit = min(int(vmem_cap * 0.9), max(16 << 20, buf_bytes + (4 << 20)))

    cost = pl.CostEstimate(
        flops=3 * rows * dim,
        transcendentals=rows,
        bytes_accessed=rows * dim_b * (in_bytes + out_bytes) + dim_b * 4,
    )

    out = pl.pallas_call(
        functools.partial(_rmsnorm_kernel, eps=eps, inv_dim=1.0 / dim),
        out_shape=jax.ShapeDtypeStruct((rows, dim_b), out_dtype),
        grid_spec=pltpu.PrefetchScalarGridSpec(
            num_scalar_prefetch=0,
            grid=grid,
            in_specs=[
                pl.BlockSpec((tile_rows, dim_b), lambda i: (i, 0)),
                pl.BlockSpec((1, dim_b), lambda i: (0, 0)),  # resident weight
            ],
            out_specs=pl.BlockSpec((tile_rows, dim_b), lambda i: (i, 0)),
        ),
        compiler_params=pltpu.CompilerParams(
            dimension_semantics=("parallel",),
            vmem_limit_bytes=vmem_limit,
        ),
        cost_estimate=cost,
    )(x2d, w_f32)

    if dim_b != dim:
        out = out[:, :dim]
    return out.reshape(orig_shape)


def rmsnorm_ref(x, weight, eps: float = 1e-6):
    xf = x.astype(jnp.float32)
    ms = jnp.mean(xf * xf, axis=-1, keepdims=True)
    normed = (xf * jax.lax.rsqrt(ms + eps)).astype(x.dtype)
    return normed * weight


if __name__ == "__main__":
    key = jax.random.PRNGKey(0)
    batch, seq, hidden = 2, 8, 32
    x = jax.random.normal(key, (batch, seq, hidden), dtype=jnp.float32)
    # Deterministic parameter init: ones, as in nn.Parameter(torch.ones(dim)).
    weight = jnp.ones((hidden,), dtype=jnp.float32)

    out = rmsnorm(x, weight, eps=1e-6)
    out = jax.block_until_ready(out)

    ref = rmsnorm_ref(x, weight, eps=1e-6)
    assert out.shape == x.shape and out.dtype == ref.dtype
    assert jnp.allclose(out, ref, atol=1e-5, rtol=1e-5)
    print("KERNEL_OK")
</pallas_src>

<mosaic_0001>
module attributes {stable_mosaic.version = 11 : i64} {
  func.func @_rmsnorm_kernel(%arg0: i32, %arg1: memref<16x128xf32, #tpu.memory_space<vmem>>, %arg2: memref<1x128xf32, #tpu.memory_space<vmem>>, %arg3: memref<16x128xf32, #tpu.memory_space<vmem>>) attributes {dimension_semantics = [#tpu.dimension_semantics<parallel>], iteration_bounds = array<i64: 1>, scalar_prefetch = 0 : i64, scratch_operands = 0 : i64, tpu.core_type = #tpu.core_type<tc>, window_params = [{transform_indices = @transform_0, window_bounds = array<i64: 16, 128>}, {pipeline_mode = #tpu.pipeline_mode<synchronous>, transform_indices = @transform_1, window_bounds = array<i64: 1, 128>}, {transform_indices = @transform_2, window_bounds = array<i64: 16, 128>}]} {
    %c0 = arith.constant 0 : index
    %c0_0 = arith.constant 0 : index
    %0 = vector.load %arg1[%c0, %c0_0] : memref<16x128xf32, #tpu.memory_space<vmem>>, vector<16x128xf32>
    %1 = arith.mulf %0, %0 : vector<16x128xf32>
    %cst = arith.constant dense<0.000000e+00> : vector<16xf32>
    %2 = vector.multi_reduction <add>, %1, %cst [1] : vector<16x128xf32> to vector<16xf32>
    %3 = vector.shape_cast %2 : vector<16xf32> to vector<16x1xf32>
    %cst_1 = arith.constant 3.125000e-02 : f32
    %4 = vector.broadcast %cst_1 : f32 to vector<16x1xf32>
    %5 = arith.mulf %3, %4 : vector<16x1xf32>
    %cst_2 = arith.constant 9.99999997E-7 : f32
    %6 = vector.broadcast %cst_2 : f32 to vector<16x1xf32>
    %7 = arith.addf %5, %6 : vector<16x1xf32>
    %8 = math.rsqrt %7 : vector<16x1xf32>
    %9 = vector.broadcast %8 : vector<16x1xf32> to vector<16x128xf32>
    %10 = arith.mulf %0, %9 : vector<16x128xf32>
    %c0_3 = arith.constant 0 : index
    %c0_4 = arith.constant 0 : index
    %11 = vector.load %arg2[%c0_3, %c0_4] : memref<1x128xf32, #tpu.memory_space<vmem>>, vector<1x128xf32>
    %12 = vector.broadcast %11 : vector<1x128xf32> to vector<16x128xf32>
    %13 = arith.mulf %10, %12 : vector<16x128xf32>
    %c0_5 = arith.constant 0 : index
    %c0_6 = arith.constant 0 : index
    %14 = vector.load %arg3[%c0_5, %c0_6] : memref<16x128xf32, #tpu.memory_space<vmem>>, vector<16x128xf32>
    tpu.vector_store %arg3[%c0_5, %c0_6], %13 {strides = array<i32>} : memref<16x128xf32, #tpu.memory_space<vmem>>, vector<16x128xf32>,
    return
  }
  func.func @transform_0(%arg0: i32) -> (i32, i32) {
    %c0_i32 = arith.constant 0 : i32
    %c0_i32_0 = arith.constant 0 : i32
    return %arg0, %c0_i32 : i32, i32
  }
  func.func @transform_1(%arg0: i32) -> (i32, i32) {
    %c0_i32 = arith.constant 0 : i32
    %c0_i32_0 = arith.constant 0 : i32
    %c0_i32_1 = arith.constant 0 : i32
    return %c0_i32, %c0_i32_0 : i32, i32
  }
  func.func @transform_2(%arg0: i32) -> (i32, i32) {
    %c0_i32 = arith.constant 0 : i32
    %c0_i32_0 = arith.constant 0 : i32
    return %arg0, %c0_i32 : i32, i32
  }
}

</mosaic_0001>

<llo_original>
// kernel: tpu_custom_call.1
$region0: #{tpu_custom_call.1}
  #allocation0 [shape = 'u32[]', space=smem, size = 0x4, offset = 0x4, fixed_abs, tag = 'smem constant byte address 0x4 - core index']
  #allocation1 [shape = 'u32[144,128]{1,0:T(1,128)}', space=vmem, size = 0x12000, scoped, tag = 'internal scratch']
  %s0 = inlined_call_operand.hbm [shape: f32[16,128], index: 0, kind: input, shape index: {}]
  %s1 = inlined_call_operand.vmem [shape: f32[1,128], index: 1, kind: input, shape index: {}]
  %s2 = inlined_call_operand.hbm [shape: f32[16,128], index: 2, kind: output, shape index: {}]
  %s3 = sld [smem:[#allocation0]]
  $region22: #{tpu_custom_call.1} parent=0
    _
  %s5 = ssub.s32 1, %s3
  %s6 = scalar_select 0, %s5, %s3
  $region1: #{tpu_custom_call.1} parent=0
    #allocation2 [shape = 'u8[8192]{0}', space=vmem, size = 0x2000, scoped, tag = 'input window, operand 0, single buffered']
    #allocation3 [shape = 's32[1]{0}', space=sflag, size = 0x4, scoped, tag = 'scoped memory for tpu_custom_call.1']
    #allocation4 [shape = 's32[1]{0}', space=sflag, size = 0x4, scoped, tag = 'scoped memory for tpu_custom_call.1']
    #allocation5 [shape = 'u8[8192]{0}', space=vmem, size = 0x2000, scoped, tag = 'output window, operand 0, single buffered']
    %7 = vsyncpa [#allocation3], 0
    %8 = vsyncpa [#allocation4], 0
    // Predicated region
    $region2: #{tpu_custom_call.1} parent=1 // pred_check
      _
    $region3: #{tpu_custom_call.1} parent=1 // pred_check_branch
      %10 = sbr.rel (0) target = $region5
    $region4: #{tpu_custom_call.1} parent=1 // pred_region
      %s12 = ssub.s32 256, 256
      %13 = vsyncadd [#allocation3], %s12
      %s14 = sshll.u32 [#allocation2], 4
      %s15 = int_to_ptr.vmem [resolvable:$true] %s14
      %20 = dma.hbm_to_vmem [thread:$0]  %s0, 256, %s15, [#allocation3], 128, 128, 8
    $region5: #{tpu_custom_call.1} parent=1 // pred_fallthru
      _
    // Predicated region
    $region6: #{tpu_custom_call.1} parent=1 // pred_check
      _
    $region7: #{tpu_custom_call.1} parent=1 // pred_check_branch
      %22 = sbr.rel (0) target = $region9
    $region8: #{tpu_custom_call.1} parent=1 // pred_region
      _
    $region9: #{tpu_custom_call.1} parent=1 // pred_fallthru
      _
    // Predicated region
    $region10: #{tpu_custom_call.1} parent=1 // pred_check
      _
    $region11: #{tpu_custom_call.1} parent=1 // pred_check_branch
      %24 = sbr.rel (0) target = $region13
    $region12: #{tpu_custom_call.1} parent=1 // pred_region
      %25 = dma.done [#allocation3], 256
    $region13: #{tpu_custom_call.1} parent=1 // pred_fallthru
      _
    %v26 = vld [vmem:[#allocation2] sm:$0xff]
    %v27 = vld [vmem:[#allocation2 + $0x8] sm:$0xff]
    %v28 = vmul.f32 %v26, %v26
    %v29 = vmul.f32 %v27, %v27
    %30 = vadd.xlane.f32.xlu0 %v28
    %v31 = vpop.xlane.xlu0 %30
    %32 = vadd.xlane.f32.xlu0 %v29
    %v33 = vpop.xlane.xlu0 %32
    %v34 = vmul.f32 %v31, 0.03125
    %v35 = vmul.f32 %v33, 0.03125
    %v36 = vadd.f32 %v34, 1e-06
    %v37 = vadd.f32 %v35, 1e-06
    %v38 = vrsqrt.pop %v36
    %v39 = vrsqrt.pop %v37
    %v40 = vmul.f32 %v26, %v38
    %v41 = vmul.f32 %v27, %v39
    %v42 = vld [vmem:[%s1] sm:$0x1]
    %v44 = vlaneseq
    %v45 = vshrl.u32 %v44, 7
    %v46 = vsub.s32 0, %v45
    %v47 = vrot.slane %v42, %v46
    %v49 = vmul.f32 %v40, %v47
    %v50 = vmul.f32 %v41, %v47
    %51 = vst [vmem:[#allocation5] sm:$0xff] %v49
    %52 = vst [vmem:[#allocation5 + $0x8] sm:$0xff] %v50
    // Predicated region
    $region14: #{tpu_custom_call.1} parent=1 // pred_check
      _
    $region15: #{tpu_custom_call.1} parent=1 // pred_check_branch
      %54 = sbr.rel (0) target = $region17
    $region16: #{tpu_custom_call.1} parent=1 // pred_region
      %s56 = ssub.s32 256, 256
      %57 = vsyncadd [#allocation4], %s56
      %s58 = sshll.u32 [#allocation5], 4
      %s59 = int_to_ptr.vmem [resolvable:$true] %s58
      %64 = dma.vmem_to_hbm [thread:$0]  %s59, 256, %s2, [#allocation4], 128, 128, 8
    $region17: #{tpu_custom_call.1} parent=1 // pred_fallthru
      _
    // Predicated region
    $region18: #{tpu_custom_call.1} parent=1 // pred_check
      _
    $region19: #{tpu_custom_call.1} parent=1 // pred_check_branch
      %66 = sbr.rel (0) target = $region21
    $region20: #{tpu_custom_call.1} parent=1 // pred_region
      %67 = dma.done [#allocation4], 256
    $region21: #{tpu_custom_call.1} parent=1 // pred_fallthru
      _
    %68 = vsyncpa [#allocation3], 1
    %69 = vsyncpa [#allocation4], 1

</llo_original>
